<compile_context>
chip_gen: v7x
topology: tpu7x:2x2x1
jax: 0.10.0
libtpu: 0.0.40
codegen_flags: <defaults>
</compile_context>

<pallas_src>
import functools

import jax
import jax.numpy as jnp
from jax.experimental import pallas as pl
from jax.experimental.pallas import tpu as pltpu


def _attention2d_kernel(x_ref, w1t_ref, w2t_ref, b2_ref, o_ref, acc_ref, *,
                        inv_temperature, inv_hw):
    """One (batch-tile, spatial-tile) grid step.

    x_ref:   (tb, C, t_hw)  -- spatial chunk, NCHW kept as-is (H*W on lanes)
    w1t_ref: (C, H1)        -- fc1 weight (transposed), VMEM-resident
    w2t_ref: (H1, K)        -- fc2 weight (transposed), VMEM-resident
    b2_ref:  (1, K)         -- fc2 bias
    o_ref:   (tb, K)        -- softmax output (written at the last spatial step)
    acc_ref: (tb, C) f32    -- spatial-sum accumulator (persists across steps)
    """
    s = pl.program_id(1)

    @pl.when(s == 0)
    def _init():
        acc_ref[...] = jnp.zeros_like(acc_ref)

    # Partial spatial sum.  Upcast keeps accuracy when bf16 activations are
    # streamed.  Summing over the lane axis is (t_hw/128 - 1) VALU vreg-adds
    # per row plus a single XLU cross-lane reduce, so the hot loop stays
    # cleanly DMA-bound on every generation.
    x = x_ref[...].astype(jnp.float32)
    acc_ref[...] += jnp.sum(x, axis=2)                                   # (tb, C)

    @pl.when(s == pl.num_programs(1) - 1)
    def _finalize():
        # AdaptiveAvgPool2d(1): divide by the TRUE H*W (not the tile size).
        pooled = acc_ref[...] * jnp.float32(inv_hw)                      # (tb, C)

        # fc1: 1x1 conv (no bias) == pooled @ W1^T, then ReLU.
        h = jnp.dot(pooled, w1t_ref[...], preferred_element_type=jnp.float32)
        h = jnp.maximum(h, 0.0)                                          # (tb, H1)

        # fc2: 1x1 conv with bias == h @ W2^T + b2, scaled by 1/temperature.
        logits = jnp.dot(h, w2t_ref[...], preferred_element_type=jnp.float32)
        logits = (logits + b2_ref[...]) * jnp.float32(inv_temperature)   # (tb, K)

        # Temperature-scaled softmax along K (max-subtracted for stability).
        m = jnp.max(logits, axis=-1, keepdims=True)
        e = jnp.exp(logits - m)
        denom = jnp.sum(e, axis=-1, keepdims=True)
        # approx=False: runs once per batch tile (negligible cost) and keeps
        # the 1e-5 sum-to-1 property exact; approx=True would be free on the
        # EUP but is unnecessary here.
        o_ref[...] = (e * pl.reciprocal(denom, approx=False)).astype(o_ref.dtype)


def _pick_spatial_tile(hw, cap_elems):
    """Largest legal spatial tile <= cap_elems.

    Legal tiles are multiples of 128 that divide hw (lane-aligned blocks), or
    hw itself (a full-extent block is always legal).
    """
    if hw <= cap_elems:
        return hw
    best = None
    d = 128
    while d <= cap_elems:
        if hw % d == 0:
            best = d
        d += 128
    return best if best is not None else hw


def attention2d_forward(x_nchw, w1, w2, b2, temperature, *, tb=None, t_hw=None,
                        x_buffer_bytes=8 << 20):
    """attention2d.forward.

    x_nchw: (B, C, H, W);  w1: (H1, C, 1, 1);  w2: (K, H1, 1, 1);  b2: (K,).
    Returns f32 softmax attention weights of shape (B, K).
    """
    assert temperature % 3 == 1, "attention2d requires temperature % 3 == 1"
    B, C, H, W = x_nchw.shape
    HW = H * W
    H1 = w1.shape[0]
    K = w2.shape[0]
    itemsize = jnp.dtype(x_nchw.dtype).itemsize

    # Free reshape (no HBM traffic): NCHW -> (B, C, H*W).  Spatial on lanes.
    # (For NHWC-native models with C a multiple of 128, a channels-on-lanes
    # variant of this kernel would be preferable; not needed for NCHW input.)
    x_flat = x_nchw.reshape(B, C, HW)
    w1t = w1[:, :, 0, 0].T.astype(jnp.float32)            # (C, H1)
    w2t = w2[:, :, 0, 0].T.astype(jnp.float32)            # (H1, K)
    b2_2d = b2.reshape(1, K).astype(jnp.float32)          # (1, K)

    # Batch tile: multiple of 8 (sublane-aligned output block) or full batch.
    # Prefer >= 2 batch tiles so the "parallel" axis feeds both v7x cores.
    if tb is None:
        tb = 8 if (B % 8 == 0 and B >= 16) else B
    assert B % tb == 0 and (tb == B or tb % 8 == 0)

    # Spatial tile: dtype-aware budget per streamed x buffer.  The VMEM block
    # pads C up to 8 sublanes, so account for that.
    c_pad = -(-C // 8) * 8
    if t_hw is None:
        cap = max(128, x_buffer_bytes // (itemsize * tb * c_pad))
        t_hw = _pick_spatial_tile(HW, cap)
    assert HW % t_hw == 0 and (t_hw == HW or t_hw % 128 == 0)

    # Explicit VMEM budget: double-buffered x block + room for the f32 upcast
    # temporary + weights/accumulator/compiler scratch.  Setting it explicitly
    # matters on v5e (16 MiB scoped default) and guards v7x (64 MiB physical).
    x_block_bytes = tb * c_pad * t_hw * itemsize
    needed = 2 * x_block_bytes + tb * c_pad * t_hw * 4 + (2 << 20)
    vmem_limit = max(32 << 20, needed)
    if vmem_limit > (48 << 20):
        # TODO(synk): add a padded/masked tail-tile path for awkward H*W with
        # no 128-aligned divisor instead of refusing.
        raise ValueError(
            f"spatial tile t_hw={t_hw} needs ~{needed >> 20} MiB of VMEM; "
            "pick a smaller t_hw or pad H*W to a multiple of 128.")

    grid = (B // tb, HW // t_hw)   # reduction (spatial) axis last

    kernel = functools.partial(
        _attention2d_kernel,
        inv_temperature=1.0 / float(temperature),
        inv_hw=1.0 / float(HW),
    )

    # Advisory cost estimate: long, HBM-read-bound custom call.
    bytes_accessed = (x_flat.size * itemsize + w1t.size * 4 + w2t.size * 4
                      + b2_2d.size * 4 + B * K * 4)
    cost = pl.CostEstimate(
        flops=int(B * HW * C + 2 * B * C * H1 + 2 * B * H1 * K + 8 * B * K),
        transcendentals=int(B * K),
        bytes_accessed=int(bytes_accessed),
    )

    return pl.pallas_call(
        kernel,
        out_shape=jax.ShapeDtypeStruct((B, K), jnp.float32),
        grid_spec=pltpu.PrefetchScalarGridSpec(
            num_scalar_prefetch=0,
            grid=grid,
            in_specs=[
                # x streamed tile-by-tile (double-buffered by the pipeline).
                pl.BlockSpec((tb, C, t_hw), lambda b, s: (b, 0, s)),
                # Weights / bias: constant index_maps -> stay VMEM-resident.
                pl.BlockSpec((C, H1), lambda b, s: (0, 0)),
                pl.BlockSpec((H1, K), lambda b, s: (0, 0)),
                pl.BlockSpec((1, K), lambda b, s: (0, 0)),
            ],
            # Output block constant over the spatial axis (written at finalize).
            out_specs=pl.BlockSpec((tb, K), lambda b, s: (b, 0)),
            scratch_shapes=[pltpu.VMEM((tb, C), jnp.float32)],
        ),
        compiler_params=pltpu.CompilerParams(
            dimension_semantics=("parallel", "arbitrary"),
            vmem_limit_bytes=int(vmem_limit)),
        cost_estimate=cost,
    )(x_flat, w1t, w2t, b2_2d)


def _kaiming_normal_fan_out(key, shape):
    # nn.init.kaiming_normal_(mode='fan_out', nonlinearity='relu') for Conv2d:
    # fan_out = out_channels * kh * kw ; std = sqrt(2 / fan_out)
    out_ch, _, kh, kw = shape
    std = (2.0 / (out_ch * kh * kw)) ** 0.5
    return std * jax.random.normal(key, shape, dtype=jnp.float32)


def _reference(x, w1, w2, b2, temperature):
    pooled = jnp.mean(x.astype(jnp.float32), axis=(2, 3))   # (B, C)
    h = jnp.maximum(pooled @ w1[:, :, 0, 0].T, 0.0)          # (B, H1)
    logits = h @ w2[:, :, 0, 0].T + b2[None, :]              # (B, K)
    return jax.nn.softmax(logits / temperature, axis=1)


if __name__ == "__main__":
    # Module config: in_planes=4, ratios=0.25, K=4, temperature=4 (4 % 3 == 1).
    in_planes = 4
    ratios = 0.25
    K = 4
    temperature = 4
    hidden_planes = int(in_planes * ratios) + 1   # in_planes != 3 branch -> 2

    B, H, W = 2, 16, 16

    key = jax.random.PRNGKey(0)
    kx, kw1, kw2 = jax.random.split(key, 3)

    x = jax.random.normal(kx, (B, in_planes, H, W), dtype=jnp.float32)
    w1 = _kaiming_normal_fan_out(kw1, (hidden_planes, in_planes, 1, 1))  # fc1 weight
    w2 = _kaiming_normal_fan_out(kw2, (K, hidden_planes, 1, 1))          # fc2 weight
    b2 = jnp.zeros((K,), dtype=jnp.float32)                              # fc2 bias (init 0)

    # t_hw=128 forces a 2-step streamed spatial reduction even at this toy
    # size so the init/accumulate/finalize (pl.when) path is exercised.
    out = attention2d_forward(x, w1, w2, b2, temperature, t_hw=128)
    out = jax.block_until_ready(out)

    ref = _reference(x, w1, w2, b2, temperature)
    assert out.shape == (B, K)
    assert jnp.allclose(out, ref, atol=1e-5, rtol=1e-5)
    assert jnp.allclose(jnp.sum(out, axis=1), 1.0, atol=1e-5)

    print("KERNEL_OK")
</pallas_src>

<mosaic_0001>
module attributes {stable_mosaic.version = 11 : i64} {
  func.func @_attention2d_kernel(%arg0: i32, %arg1: i32, %arg2: memref<2x4x128xf32, #tpu.memory_space<vmem>>, %arg3: memref<4x2xf32, #tpu.memory_space<vmem>>, %arg4: memref<2x4xf32, #tpu.memory_space<vmem>>, %arg5: memref<1x4xf32, #tpu.memory_space<vmem>>, %arg6: memref<2x4xf32, #tpu.memory_space<vmem>>, %arg7: memref<2x4xf32, #tpu.memory_space<vmem>>) attributes {dimension_semantics = [#tpu.dimension_semantics<parallel>, #tpu.dimension_semantics<arbitrary>], iteration_bounds = array<i64: 1, 2>, scalar_prefetch = 0 : i64, scratch_operands = 1 : i64, tpu.core_type = #tpu.core_type<tc>, window_params = [{transform_indices = @transform_0, window_bounds = array<i64: 2, 4, 128>}, {pipeline_mode = #tpu.pipeline_mode<synchronous>, transform_indices = @transform_1, window_bounds = array<i64: 4, 2>}, {pipeline_mode = #tpu.pipeline_mode<synchronous>, transform_indices = @transform_2, window_bounds = array<i64: 2, 4>}, {pipeline_mode = #tpu.pipeline_mode<synchronous>, transform_indices = @transform_3, window_bounds = array<i64: 1, 4>}, {transform_indices = @transform_4, window_bounds = array<i64: 2, 4>}]} {
    %c0_i32 = arith.constant 0 : i32
    %0 = arith.cmpi eq, %arg1, %c0_i32 : i32
    %1 = arith.extui %0 : i1 to i32
    %c0_i32_0 = arith.constant 0 : i32
    %2 = arith.cmpi ne, %1, %c0_i32_0 : i32
    scf.if %2 {
      %cst_8 = arith.constant 0.000000e+00 : f32
      %11 = vector.broadcast %cst_8 : f32 to vector<2x4xf32>
      %c0_9 = arith.constant 0 : index
      %c0_10 = arith.constant 0 : index
      %12 = vector.load %arg7[%c0_9, %c0_10] : memref<2x4xf32, #tpu.memory_space<vmem>>, vector<2x4xf32>
      tpu.vector_store %arg7[%c0_9, %c0_10], %11 {strides = array<i32>} : memref<2x4xf32, #tpu.memory_space<vmem>>, vector<2x4xf32>,
    } else {
    }
    %c0 = arith.constant 0 : index
    %c0_1 = arith.constant 0 : index
    %c0_2 = arith.constant 0 : index
    %3 = vector.load %arg2[%c0, %c0_1, %c0_2] : memref<2x4x128xf32, #tpu.memory_space<vmem>>, vector<2x4x128xf32>
    %c0_3 = arith.constant 0 : index
    %c0_4 = arith.constant 0 : index
    %4 = vector.load %arg7[%c0_3, %c0_4] : memref<2x4xf32, #tpu.memory_space<vmem>>, vector<2x4xf32>
    %cst = arith.constant dense<0.000000e+00> : vector<2x4xf32>
    %5 = vector.multi_reduction <add>, %3, %cst [2] : vector<2x4x128xf32> to vector<2x4xf32>
    %6 = arith.addf %4, %5 : vector<2x4xf32>
    %c0_5 = arith.constant 0 : index
    %c0_6 = arith.constant 0 : index
    %7 = vector.load %arg7[%c0_5, %c0_6] : memref<2x4xf32, #tpu.memory_space<vmem>>, vector<2x4xf32>
    tpu.vector_store %arg7[%c0_5, %c0_6], %6 {strides = array<i32>} : memref<2x4xf32, #tpu.memory_space<vmem>>, vector<2x4xf32>,
    %c1_i32 = arith.constant 1 : i32
    %8 = arith.cmpi eq, %arg1, %c1_i32 : i32
    %9 = arith.extui %8 : i1 to i32
    %c0_i32_7 = arith.constant 0 : i32
    %10 = arith.cmpi ne, %9, %c0_i32_7 : i32
    scf.if %10 {
      %c0_8 = arith.constant 0 : index
      %c0_9 = arith.constant 0 : index
      %11 = vector.load %arg7[%c0_8, %c0_9] : memref<2x4xf32, #tpu.memory_space<vmem>>, vector<2x4xf32>
      %cst_10 = arith.constant 3.906250e-03 : f32
      %12 = vector.broadcast %cst_10 : f32 to vector<2x4xf32>
      %13 = arith.mulf %11, %12 : vector<2x4xf32>
      %c0_11 = arith.constant 0 : index
      %c0_12 = arith.constant 0 : index
      %14 = vector.load %arg3[%c0_11, %c0_12] : memref<4x2xf32, #tpu.memory_space<vmem>>, vector<4x2xf32>
      %cst_13 = arith.constant dense<0.000000e+00> : vector<2x2xf32>
      %15 = tpu.matmul %13, %14, %cst_13 {dimension_numbers = #tpu.dot_dimension_numbers<[1], [0], [0], [1], [0, 0, 1, 1], [], []>} : vector<2x4xf32>, vector<4x2xf32>, vector<2x2xf32> -> vector<2x2xf32>
      %cst_14 = arith.constant 0.000000e+00 : f32
      %16 = vector.broadcast %cst_14 : f32 to vector<2x2xf32>
      %17 = arith.maximumf %15, %16 : vector<2x2xf32>
      %c0_15 = arith.constant 0 : index
      %c0_16 = arith.constant 0 : index
      %18 = vector.load %arg4[%c0_15, %c0_16] : memref<2x4xf32, #tpu.memory_space<vmem>>, vector<2x4xf32>
      %cst_17 = arith.constant dense<0.000000e+00> : vector<2x4xf32>
      %19 = tpu.matmul %17, %18, %cst_17 {dimension_numbers = #tpu.dot_dimension_numbers<[1], [0], [0], [1], [0, 0, 1, 1], [], []>} : vector<2x2xf32>, vector<2x4xf32>, vector<2x4xf32> -> vector<2x4xf32>
      %c0_18 = arith.constant 0 : index
      %c0_19 = arith.constant 0 : index
      %20 = vector.load %arg5[%c0_18, %c0_19] : memref<1x4xf32, #tpu.memory_space<vmem>>, vector<1x4xf32>
      %21 = vector.broadcast %20 : vector<1x4xf32> to vector<2x4xf32>
      %22 = arith.addf %19, %21 : vector<2x4xf32>
      %cst_20 = arith.constant 2.500000e-01 : f32
      %23 = vector.broadcast %cst_20 : f32 to vector<2x4xf32>
      %24 = arith.mulf %22, %23 : vector<2x4xf32>
      %cst_21 = arith.constant dense<0xFF800000> : vector<2xf32>
      %25 = vector.multi_reduction <maximumf>, %24, %cst_21 [1] : vector<2x4xf32> to vector<2xf32>
      %26 = vector.shape_cast %25 : vector<2xf32> to vector<2x1xf32>
      %27 = vector.broadcast %26 : vector<2x1xf32> to vector<2x4xf32>
      %28 = arith.subf %24, %27 : vector<2x4xf32>
      %29 = math.exp %28 : vector<2x4xf32>
      %cst_22 = arith.constant dense<0.000000e+00> : vector<2xf32>
      %30 = vector.multi_reduction <add>, %29, %cst_22 [1] : vector<2x4xf32> to vector<2xf32>
      %31 = vector.shape_cast %30 : vector<2xf32> to vector<2x1xf32>
      %32 = tpu.reciprocal %31 : vector<2x1xf32> -> vector<2x1xf32>
      %33 = vector.broadcast %32 : vector<2x1xf32> to vector<2x4xf32>
      %34 = arith.mulf %29, %33 : vector<2x4xf32>
      %c0_23 = arith.constant 0 : index
      %c0_24 = arith.constant 0 : index
      %35 = vector.load %arg6[%c0_23, %c0_24] : memref<2x4xf32, #tpu.memory_space<vmem>>, vector<2x4xf32>
      tpu.vector_store %arg6[%c0_23, %c0_24], %34 {strides = array<i32>} : memref<2x4xf32, #tpu.memory_space<vmem>>, vector<2x4xf32>,
    } else {
    }
    return
  }
  func.func @transform_0(%arg0: i32, %arg1: i32) -> (i32, i32, i32) {
    %c0_i32 = arith.constant 0 : i32
    %c0_i32_0 = arith.constant 0 : i32
    return %arg0, %c0_i32, %arg1 : i32, i32, i32
  }
  func.func @transform_1(%arg0: i32, %arg1: i32) -> (i32, i32) {
    %c0_i32 = arith.constant 0 : i32
    %c0_i32_0 = arith.constant 0 : i32
    %c0_i32_1 = arith.constant 0 : i32
    return %c0_i32, %c0_i32_0 : i32, i32
  }
  func.func @transform_2(%arg0: i32, %arg1: i32) -> (i32, i32) {
    %c0_i32 = arith.constant 0 : i32
    %c0_i32_0 = arith.constant 0 : i32
    %c0_i32_1 = arith.constant 0 : i32
    return %c0_i32, %c0_i32_0 : i32, i32
  }
  func.func @transform_3(%arg0: i32, %arg1: i32) -> (i32, i32) {
    %c0_i32 = arith.constant 0 : i32
    %c0_i32_0 = arith.constant 0 : i32
    %c0_i32_1 = arith.constant 0 : i32
    return %c0_i32, %c0_i32_0 : i32, i32
  }
  func.func @transform_4(%arg0: i32, %arg1: i32) -> (i32, i32) {
    %c0_i32 = arith.constant 0 : i32
    %c0_i32_0 = arith.constant 0 : i32
    return %arg0, %c0_i32 : i32, i32
  }
}

</mosaic_0001>

<llo_original>
// kernel: tpu_custom_call.1
$region0: #{tpu_custom_call.1}
  #allocation0 [shape = 'u32[]', space=smem, size = 0x4, offset = 0x4, fixed_abs, tag = 'smem constant byte address 0x4 - core index']
  #allocation1 [shape = 'u32[144,128]{1,0:T(1,128)}', space=vmem, size = 0x12000, scoped, tag = 'internal scratch']
  #allocation2 [shape = 'f32[2,4]{1,0:T(2,128)}', space=vmem, size = 0x400, scoped, tag = 'scratch operand']
  %s0 = inlined_call_operand.hbm [shape: f32[2,4,256], index: 0, kind: input, shape index: {}]
  %s1 = inlined_call_operand.vmem [shape: f32[4,2], index: 1, kind: input, shape index: {}]
  %s2 = inlined_call_operand.vmem [shape: f32[2,4], index: 2, kind: input, shape index: {}]
  %s3 = inlined_call_operand.vmem [shape: f32[1,4], index: 3, kind: input, shape index: {}]
  %s4 = inlined_call_operand.hbm [shape: f32[2,4], index: 4, kind: output, shape index: {}]
  %s5 = sld [smem:[#allocation0]]
  $region61: #{tpu_custom_call.1} parent=0
    _
  %s7 = ssub.s32 1, %s5
  %s8 = scalar_select 0, %s7, %s5
  $region1: #{tpu_custom_call.1} parent=0
    #allocation3 [shape = 'u8[8192]{0}', space=vmem, size = 0x2000, scoped, tag = 'input window, operand 0']
    #allocation4 [shape = 's32[2]{0}', space=sflag, size = 0x8, scoped, tag = 'scoped memory for tpu_custom_call.1']
    #allocation5 [shape = 's32[2]{0}', space=sflag, size = 0x8, scoped, tag = 'scoped memory for tpu_custom_call.1']
    #allocation6 [shape = 'u8[1024]{0}', space=vmem, size = 0x400, scoped, tag = 'output window, operand 0, single buffered']
    %9 = vsyncpa [#allocation4], 0
    %s10 = scalar_lea.sflag [#allocation4], 1
    %11 = vsyncpa %s10, 0
    %12 = vsyncpa [#allocation5], 0
    loop: start=0, step=1, limit=4
    $region2: #{tpu_custom_call.1} parent=1 // loop_pre_header
      _
    $region3: #{tpu_custom_call.1} parent=1 // loop_header
      %s14 = sphi 0, %s18
      %p15 = scmp.ge.s32.totalorder %s14, 4
      %s21 = sphi 0, %s33
      %s22 = sphi 0, %s29
      %s23 = sphi 0, %s21
      %s24 = sphi 0, %s22
      %s25 = sphi 0, %s23
      %s26 = sphi 0, %s24
      %s38 = sphi 0, %s40
      %s41 = sphi 0, %s38
      %s42 = sphi 0, %s41
      %s58 = sphi 0, %s42
      %s62 = sphi 0, %s62
      %s64 = sphi 0, %s62
      %s65 = sphi 0, %s64
      %s79 = sphi 0, %s65
      %s83 = sphi 0, %s83
      %s85 = sphi 0, %s83
      %s86 = sphi 0, %s85
      %s100 = sphi 0, %s86
      %s104 = sphi 0, %s104
      %s106 = sphi 0, %s104
      %s107 = sphi 0, %s106
      %s121 = sphi 0, %s107
      %s127 = sphi 0, %s129
      %s130 = sphi 0, %s127
      %s131 = sphi 0, %s130
      %s147 = sphi 0, %s131
    $region4: #{tpu_custom_call.1} parent=1 // loop_header_branch
      %17 = sbr.rel (%p15) target = $region8
    $region5: #{tpu_custom_call.1} parent=1 // loop_body
      %s19 = ssub.s32 %s14, 1
      %s20 = ssub.s32 %s14, 2
      %s27 = sadd.s32 1, %s22
      %p28 = scmp.ge.s32.totalorder %s27, 2
      %s29 = scalar_select %p28, 0, %s27
      %s30 = sadd.s32 1, %s21
      %s31 = scalar_select %p28, %s30, %s21
      %p32 = scmp.ge.s32.totalorder %s31, 1
      %s33 = scalar_select %p32, 0, %s31
      %s34 = ssub.s32 %s21, %s33
      %s35 = ssub.s32 %s22, %s29
      %s36 = sor.u32 %s34, %s35
      %p37 = scmp.eq.s32.totalorder %s36, 0
      %s39 = sadd.s32 %s38, 1
      %s40 = scalar_select %p37, %s38, %s39
      %p43 = pneg %p37
      %p44 = scmp.eq.s32.totalorder %s14, 1
      %p45 = por %p43, %p44
      %p46 = scmp.ne.s32.totalorder %s38, %s41
      %p47 = scmp.eq.s32.totalorder %s14, 0
      %p48 = por %p46, %p47
      %p49 = scmp.ne.s32.totalorder %s38, %s41
      %p50 = scmp.eq.s32.totalorder %s19, 1
      %p51 = por %p49, %p50
      %p52 = scmp.ne.s32.totalorder %s41, %s42
      %p53 = scmp.eq.s32.totalorder %s19, 0
      %p54 = por %p52, %p53
      %p55 = scmp.ne.s32.totalorder %s41, %s42
      %p56 = scmp.eq.s32.totalorder %s20, 1
      %p57 = por %p55, %p56
      %p59 = scmp.ne.s32.totalorder %s42, %s58
      %p60 = scmp.eq.s32.totalorder %s20, 0
      %p61 = por %p59, %p60
      %s63 = sadd.s32 %s62, 1
      %p66 = scmp.eq.s32.totalorder %s14, 1
      %p67 = scmp.ne.s32.totalorder %s62, %s64
      %p68 = scmp.eq.s32.totalorder %s14, 0
      %p69 = por %p67, %p68
      %p70 = scmp.ne.s32.totalorder %s62, %s64
      %p71 = scmp.eq.s32.totalorder %s19, 1
      %p72 = por %p70, %p71
      %p73 = scmp.ne.s32.totalorder %s64, %s65
      %p74 = scmp.eq.s32.totalorder %s19, 0
      %p75 = por %p73, %p74
      %p76 = scmp.ne.s32.totalorder %s64, %s65
      %p77 = scmp.eq.s32.totalorder %s20, 1
      %p78 = por %p76, %p77
      %p80 = scmp.ne.s32.totalorder %s65, %s79
      %p81 = scmp.eq.s32.totalorder %s20, 0
      %p82 = por %p80, %p81
      %s84 = sadd.s32 %s83, 1
      %p87 = scmp.eq.s32.totalorder %s14, 1
      %p88 = scmp.ne.s32.totalorder %s83, %s85
      %p89 = scmp.eq.s32.totalorder %s14, 0
      %p90 = por %p88, %p89
      %p91 = scmp.ne.s32.totalorder %s83, %s85
      %p92 = scmp.eq.s32.totalorder %s19, 1
      %p93 = por %p91, %p92
      %p94 = scmp.ne.s32.totalorder %s85, %s86
      %p95 = scmp.eq.s32.totalorder %s19, 0
      %p96 = por %p94, %p95
      %p97 = scmp.ne.s32.totalorder %s85, %s86
      %p98 = scmp.eq.s32.totalorder %s20, 1
      %p99 = por %p97, %p98
      %p101 = scmp.ne.s32.totalorder %s86, %s100
      %p102 = scmp.eq.s32.totalorder %s20, 0
      %p103 = por %p101, %p102
      %s105 = sadd.s32 %s104, 1
      %p108 = scmp.eq.s32.totalorder %s14, 1
      %p109 = scmp.ne.s32.totalorder %s104, %s106
      %p110 = scmp.eq.s32.totalorder %s14, 0
      %p111 = por %p109, %p110
      %p112 = scmp.ne.s32.totalorder %s104, %s106
      %p113 = scmp.eq.s32.totalorder %s19, 1
      %p114 = por %p112, %p113
      %p115 = scmp.ne.s32.totalorder %s106, %s107
      %p116 = scmp.eq.s32.totalorder %s19, 0
      %p117 = por %p115, %p116
      %p118 = scmp.ne.s32.totalorder %s106, %s107
      %p119 = scmp.eq.s32.totalorder %s20, 1
      %p120 = por %p118, %p119
      %p122 = scmp.ne.s32.totalorder %s107, %s121
      %p123 = scmp.eq.s32.totalorder %s20, 0
      %p124 = por %p122, %p123
      %s125 = ssub.s32 %s21, %s33
      %p126 = scmp.eq.s32.totalorder %s125, 0
      %s128 = sadd.s32 %s127, 1
      %s129 = scalar_select %p126, %s127, %s128
      %p132 = pneg %p126
      %p133 = scmp.eq.s32.totalorder %s14, 1
      %p134 = por %p132, %p133
      %p135 = scmp.ne.s32.totalorder %s127, %s130
      %p136 = scmp.eq.s32.totalorder %s14, 0
      %p137 = por %p135, %p136
      %p138 = scmp.ne.s32.totalorder %s127, %s130
      %p139 = scmp.eq.s32.totalorder %s19, 1
      %p140 = por %p138, %p139
      %p141 = scmp.ne.s32.totalorder %s130, %s131
      %p142 = scmp.eq.s32.totalorder %s19, 0
      %p143 = por %p141, %p142
      %p144 = scmp.ne.s32.totalorder %s130, %s131
      %p145 = scmp.eq.s32.totalorder %s20, 1
      %p146 = por %p144, %p145
      %p148 = scmp.ne.s32.totalorder %s131, %s147
      %p149 = scmp.eq.s32.totalorder %s20, 0
      %p150 = por %p148, %p149
      %p151 = scmp.le.s32.totalorder 1, %s14
      %p152 = scmp.lt.s32.totalorder %s14, 3
      %p153 = pnand %p151, %p152
      %p154 = pneg %p153
      // Predicated region
      $region9: #{tpu_custom_call.1} parent=5 // pred_check
        _
      $region10: #{tpu_custom_call.1} parent=5 // pred_check_branch
        %156 = sbr.rel (%p153) target = $region12
      $region11: #{tpu_custom_call.1} parent=5 // pred_region
        %s157 = ssub.s32 %s14, 1
        // Predicated region
        $region13: #{tpu_custom_call.1} parent=11 // pred_check
          %p158 = pneg %p75
        $region14: #{tpu_custom_call.1} parent=11 // pred_check_branch
          %160 = sbr.rel (%p158) target = $region16
        $region15: #{tpu_custom_call.1} parent=11 // pred_region
          _
        $region16: #{tpu_custom_call.1} parent=11 // pred_fallthru
          _
        // Predicated region
        $region17: #{tpu_custom_call.1} parent=11 // pred_check
          %p161 = pneg %p96
        $region18: #{tpu_custom_call.1} parent=11 // pred_check_branch
          %163 = sbr.rel (%p161) target = $region20
        $region19: #{tpu_custom_call.1} parent=11 // pred_region
          _
        $region20: #{tpu_custom_call.1} parent=11 // pred_fallthru
          _
        // Predicated region
        $region21: #{tpu_custom_call.1} parent=11 // pred_check
          %p164 = pneg %p117
        $region22: #{tpu_custom_call.1} parent=11 // pred_check_branch
          %166 = sbr.rel (%p164) target = $region24
        $region23: #{tpu_custom_call.1} parent=11 // pred_region
          _
        $region24: #{tpu_custom_call.1} parent=11 // pred_fallthru
          _
      $region12: #{tpu_custom_call.1} parent=5 // pred_fallthru
        _
      %p167 = scmp.lt.s32.totalorder %s14, 2
      // Predicated region
      $region25: #{tpu_custom_call.1} parent=5 // pred_check
        %p168 = pneg %p167
      $region26: #{tpu_custom_call.1} parent=5 // pred_check_branch
        %170 = sbr.rel (%p168) target = $region28
      $region27: #{tpu_custom_call.1} parent=5 // pred_region
        // Predicated region
        $region29: #{tpu_custom_call.1} parent=27 // pred_check
          %p171 = pneg %p48
        $region30: #{tpu_custom_call.1} parent=27 // pred_check_branch
          %173 = sbr.rel (%p171) target = $region32
        $region31: #{tpu_custom_call.1} parent=27 // pred_region
          %s174 = sand.u32 %s38, 1
          %s175 = scalar_lea.sflag [#allocation4], %s174
          %s176 = sand.u32 %s38, 1
          %s177 = smul.addr %s176, 8
          %s178 = scalar_lea.vmem [#allocation3], %s177
          %s179 = smul.u32 2, %s21
          %s181 = ssub.s32 128, 128
          %182 = vsyncadd %s175, %s181
          %s183 = smul.addr %s179, 2
          %s184 = sadd.s32 %s22, %s183
          %s185 = smul.addr %s184, 64
          %s186 = scalar_lea.hbm %s0, %s185
          %s187 = sshll.u32 %s178, 4
          %s188 = int_to_ptr.vmem [resolvable:$true] %s187
          %193 = dma.hbm_to_vmem [thread:$0]  %s186, 128, %s188, %s175, 128, 64, 4
        $region32: #{tpu_custom_call.1} parent=27 // pred_fallthru
          _
      $region28: #{tpu_custom_call.1} parent=5 // pred_fallthru
        _
      %p194 = scmp.le.s32.totalorder 1, %s14
      %p195 = scmp.lt.s32.totalorder %s14, 3
      %p196 = pnand %p194, %p195
      %p197 = pneg %p196
      // Predicated region
      $region33: #{tpu_custom_call.1} parent=5 // pred_check
        _
      $region34: #{tpu_custom_call.1} parent=5 // pred_check_branch
        %199 = sbr.rel (%p196) target = $region36
      $region35: #{tpu_custom_call.1} parent=5 // pred_region
        %s200 = ssub.s32 %s14, 1
        %s201 = sand.u32 %s41, 1
        %s202 = scalar_lea.sflag [#allocation4], %s201
        %s203 = sand.u32 %s41, 1
        %s204 = smul.addr %s203, 8
        %s205 = scalar_lea.vmem [#allocation3], %s204
        // Predicated region
        $region37: #{tpu_custom_call.1} parent=35 // pred_check
          %p206 = pneg %p54
        $region38: #{tpu_custom_call.1} parent=35 // pred_check_branch
          %208 = sbr.rel (%p206) target = $region40
        $region39: #{tpu_custom_call.1} parent=35 // pred_region
          %209 = dma.done %s202, 128
        $region40: #{tpu_custom_call.1} parent=35 // pred_fallthru
          _
        %s210 = sand.u32 %s41, 1
        %s211 = scalar_lea.sflag [#allocation4], %s210
        %s212 = sand.u32 %s41, 1
        %s213 = smul.addr %s212, 8
        %s214 = scalar_lea.vmem [#allocation3], %s213
        %p215 = pneg %p54
        %p216 = pneg %p51
        %p217 = pneg %p75
        %p218 = pneg %p72
        %p219 = pneg %p96
        %p220 = pneg %p93
        %p221 = pneg %p117
        %p222 = pneg %p114
        %p223 = pneg %p143
        %p224 = pneg %p140
        %s225 = smul.u32 2, %s23
        %p226 = scmp.eq.s32.totalorder %s24, 0
        // Predicated region
        $region41: #{tpu_custom_call.1} parent=35 // pred_check
          %p227 = pneg %p226
        $region42: #{tpu_custom_call.1} parent=35 // pred_check_branch
          %229 = sbr.rel (%p227) target = $region44
        $region43: #{tpu_custom_call.1} parent=35 // pred_region
          %vm230 = vcmask 25600
          %231 = vst.msk [vmem:[#allocation2] sm:$0x3] %vm230, 0.0
        $region44: #{tpu_custom_call.1} parent=35 // pred_fallthru
          _
        %v232 = vld [vmem:[%s205] sm:$0xf]
        %v233 = vld [vmem:[%s205 + $0x4] sm:$0xf]
        %v234 = vld [vmem:[#allocation2] sm:$0x3]
        %vm235 = vcmask 1043456
        %v236 = vsel %vm235, %v232, 0.0
        %237 = vadd.xlane.f32.xlu0 %v236
        %v238 = vpop.xlane.xlu0 %237
        %v239 = vsel %vm235, %v233, 0.0
        %240 = vadd.xlane.f32.xlu0 %v239
        %v241 = vpop.xlane.xlu0 %240
        %v244 = vlaneseq
        %v245 = vand.u32 %v244, 127
        %v246 = vlaneseq
        %v247 = vshrl.u32 %v246, 7
        %v248 = vsub.s32 %v245, %v247
        %v249 = vrot.slane %v238, %v248
        %v250 = vlaneseq
        %v251 = vshrl.u32 %v250, 7
        %v252 = vsub.s32 %v245, %v251
        %v253 = vrot.slane %v241, %v252
        %vm254 = vcmask 1041409
        %v255 = vsel %vm254, %v253, %v249
        %v257 = vadd.f32 %v234, %v255
        %vm258 = vcmask 25600
        %259 = vst.msk [vmem:[#allocation2] sm:$0x3] %vm258, %v257
        %p260 = scmp.eq.s32.totalorder %s24, 1
        // Predicated region
        $region45: #{tpu_custom_call.1} parent=35 // pred_check
          %p261 = pneg %p260
        $region46: #{tpu_custom_call.1} parent=35 // pred_check_branch
          %263 = sbr.rel (%p261) target = $region48
        $region47: #{tpu_custom_call.1} parent=35 // pred_region
          %v264 = vld [vmem:[#allocation2] sm:$0x3]
          %v265 = vmul.f32 %v264, 0.00390625
          %v266 = vld [vmem:[%s1] sm:$0xf]
          %vm267 = vcmask 31744
          %v269 = vsel %vm267, %v265, 0
          %v272 = vsel %vm235, %v266, 0
          %274 = vmatprep.subr.mxu0 0.0
          %275 = vmatpush1.msra.mxu0 %v272
          %276 = vmatprep.subr.mxu0 0.0
          %277 = vmatpush1.msra.mxu0 0.0
          %278 = vmatprep.subr.mxu0 0.0
          %279 = vmatpush1.msra.mxu0 0.0
          %280 = vmatprep.subr.mxu0 0.0
          %281 = vmatpush1.msra.mxu0 0.0
          %282 = vmatprep.subr.mxu0 0.0
          %283 = vmatpush1.msra.mxu0 0.0
          %284 = vmatprep.subr.mxu0 0.0
          %285 = vmatpush1.msra.mxu0 0.0
          %286 = vmatprep.subr.mxu0 0.0
          %287 = vmatpush1.msra.mxu0 0.0
          %288 = vmatprep.subr.mxu0 0.0
          %289 = vmatpush1.msra.mxu0 0.0
          %290 = vmatprep.subr.mxu0 0.0
          %291 = vmatpush1.msra.mxu0 0.0
          %292 = vmatprep.subr.mxu0 0.0
          %293 = vmatpush1.msra.mxu0 0.0
          %294 = vmatprep.subr.mxu0 0.0
          %295 = vmatpush1.msra.mxu0 0.0
          %296 = vmatprep.subr.mxu0 0.0
          %297 = vmatpush1.msra.mxu0 0.0
          %298 = vmatprep.subr.mxu0 0.0
          %299 = vmatpush1.msra.mxu0 0.0
          %300 = vmatprep.subr.mxu0 0.0
          %301 = vmatpush1.msra.mxu0 0.0
          %302 = vmatprep.subr.mxu0 0.0
          %303 = vmatpush1.msra.mxu0 0.0
          %304 = vmatprep.subr.mxu0 0.0
          %305 = vmatpush1.msra.mxu0 0.0
          %306 = vmatprep.subr.mxu0 0.0
          %307 = vmatpush1.msra.mxu0 0.0
          %308 = vmatprep.subr.mxu0 0.0
          %309 = vmatpush1.msra.mxu0 0.0
          %310 = vmatprep.subr.mxu0 0.0
          %311 = vmatpush1.msra.mxu0 0.0
          %312 = vmatprep.subr.mxu0 0.0
          %313 = vmatpush1.msra.mxu0 0.0
          %314 = vmatprep.subr.mxu0 0.0
          %315 = vmatpush1.msra.mxu0 0.0
          %316 = vmatprep.subr.mxu0 0.0
          %317 = vmatpush1.msra.mxu0 0.0
          %318 = vmatprep.subr.mxu0 0.0
          %319 = vmatpush1.msra.mxu0 0.0
          %320 = vmatprep.subr.mxu0 0.0
          %321 = vmatpush1.msra.mxu0 0.0
          %322 = vmatprep.subr.mxu0 0.0
          %323 = vmatpush1.msra.mxu0 0.0
          %324 = vmatprep.subr.mxu0 0.0
          %325 = vmatpush1.msra.mxu0 0.0
          %326 = vmatprep.subr.mxu0 0.0
          %327 = vmatpush1.msra.mxu0 0.0
          %328 = vmatprep.subr.mxu0 0.0
          %329 = vmatpush1.msra.mxu0 0.0
          %330 = vmatprep.subr.mxu0 0.0
          %331 = vmatpush1.msra.mxu0 0.0
          %332 = vmatprep.subr.mxu0 0.0
          %333 = vmatpush1.msra.mxu0 0.0
          %334 = vmatprep.subr.mxu0 0.0
          %335 = vmatpush1.msra.mxu0 0.0
          %336 = vmatprep.subr.mxu0 0.0
          %337 = vmatpush1.msra.mxu0 0.0
          %338 = vmatprep.mubr.f32.mxu0 0.0
          %339 = vmatmul.mubr.f32.gmra.mrb[0].mxu0 %v269
          %v340 = vpop.f32.mrb[0].mxu0
          %v341 = vadd.f32 0.0, %v340
          %v342 = vpop.f32.mrb[0].mxu0
          %343 = vdwg.mxu0
          %v344 = vmax.f32 %v341, 0.0
          %v345 = vld [vmem:[%s2] sm:$0x3]
          %v346 = vld [vmem:[%s3] sm:$0x1]
          %v348 = vlaneseq
          %v349 = vshrl.u32 %v348, 7
          %v350 = vsub.s32 0, %v349
          %v351 = vrot.slane %v346, %v350
          %vm353 = vcmask 15360
          %v355 = vsel %vm353, %v344, 0
          %vm357 = vcmask 1041408
          %v359 = vsel %vm357, %v345, 0
          %361 = vmatprep.subr.mxu0 0.0
          %362 = vmatpush1.msra.mxu0 %v359
          %363 = vmatprep.subr.mxu0 0.0
          %364 = vmatpush1.msra.mxu0 0.0
          %365 = vmatprep.subr.mxu0 0.0
          %366 = vmatpush1.msra.mxu0 0.0
          %367 = vmatprep.subr.mxu0 0.0
          %368 = vmatpush1.msra.mxu0 0.0
          %369 = vmatprep.subr.mxu0 0.0
          %370 = vmatpush1.msra.mxu0 0.0
          %371 = vmatprep.subr.mxu0 0.0
          %372 = vmatpush1.msra.mxu0 0.0
          %373 = vmatprep.subr.mxu0 0.0
          %374 = vmatpush1.msra.mxu0 0.0
          %375 = vmatprep.subr.mxu0 0.0
          %376 = vmatpush1.msra.mxu0 0.0
          %377 = vmatprep.subr.mxu0 0.0
          %378 = vmatpush1.msra.mxu0 0.0
          %379 = vmatprep.subr.mxu0 0.0
          %380 = vmatpush1.msra.mxu0 0.0
          %381 = vmatprep.subr.mxu0 0.0
          %382 = vmatpush1.msra.mxu0 0.0
          %383 = vmatprep.subr.mxu0 0.0
          %384 = vmatpush1.msra.mxu0 0.0
          %385 = vmatprep.subr.mxu0 0.0
          %386 = vmatpush1.msra.mxu0 0.0
          %387 = vmatprep.subr.mxu0 0.0
          %388 = vmatpush1.msra.mxu0 0.0
          %389 = vmatprep.subr.mxu0 0.0
          %390 = vmatpush1.msra.mxu0 0.0
          %391 = vmatprep.subr.mxu0 0.0
          %392 = vmatpush1.msra.mxu0 0.0
          %393 = vmatprep.subr.mxu0 0.0
          %394 = vmatpush1.msra.mxu0 0.0
          %395 = vmatprep.subr.mxu0 0.0
          %396 = vmatpush1.msra.mxu0 0.0
          %397 = vmatprep.subr.mxu0 0.0
          %398 = vmatpush1.msra.mxu0 0.0
          %399 = vmatprep.subr.mxu0 0.0
          %400 = vmatpush1.msra.mxu0 0.0
          %401 = vmatprep.subr.mxu0 0.0
          %402 = vmatpush1.msra.mxu0 0.0
          %403 = vmatprep.subr.mxu0 0.0
          %404 = vmatpush1.msra.mxu0 0.0
          %405 = vmatprep.subr.mxu0 0.0
          %406 = vmatpush1.msra.mxu0 0.0
          %407 = vmatprep.subr.mxu0 0.0
          %408 = vmatpush1.msra.mxu0 0.0
          %409 = vmatprep.subr.mxu0 0.0
          %410 = vmatpush1.msra.mxu0 0.0
          %411 = vmatprep.subr.mxu0 0.0
          %412 = vmatpush1.msra.mxu0 0.0
          %413 = vmatprep.subr.mxu0 0.0
          %414 = vmatpush1.msra.mxu0 0.0
          %415 = vmatprep.subr.mxu0 0.0
          %416 = vmatpush1.msra.mxu0 0.0
          %417 = vmatprep.subr.mxu0 0.0
          %418 = vmatpush1.msra.mxu0 0.0
          %419 = vmatprep.subr.mxu0 0.0
          %420 = vmatpush1.msra.mxu0 0.0
          %421 = vmatprep.subr.mxu0 0.0
          %422 = vmatpush1.msra.mxu0 0.0
          %423 = vmatprep.subr.mxu0 0.0
          %424 = vmatpush1.msra.mxu0 0.0
          %425 = vmatprep.mubr.f32.mxu0 0.0
          %426 = vmatmul.mubr.f32.gmra.mrb[0].mxu0 %v355
          %v427 = vpop.f32.mrb[0].mxu0
          %v428 = vadd.f32 %v351, %v427
          %v429 = vpop.f32.mrb[0].mxu0
          %430 = vdwg.mxu0
          %v431 = vmul.f32 %v428, 0.25
          %v432 = vsel %vm258, %v431, -inf
          %433 = vmax.xlane.f32.xlu0 %v432
          %v434 = vpop.xlane.xlu0 %433
          %v435 = vsub.f32 %v431, %v434
          %v436 = vmul.f32 %v435, 1.442695
          %v437 = vpow.pop %v436
          %v438 = vsel %vm258, %v437, 0.0
          %439 = vadd.xlane.f32.xlu0 %v438
          %v440 = vpop.xlane.xlu0 %439
          %v441 = vrcp.pop %v440
          %v442 = vmul.f32 %v437, %v441
          %443 = vst.msk [vmem:[#allocation6] sm:$0x3] %vm258, %v442
        $region48: #{tpu_custom_call.1} parent=35 // pred_fallthru
          _
        // Predicated region
        $region49: #{tpu_custom_call.1} parent=35 // pred_check
          %p444 = pneg %p140
        $region50: #{tpu_custom_call.1} parent=35 // pred_check_branch
          %446 = sbr.rel (%p444) target = $region52
        $region51: #{tpu_custom_call.1} parent=35 // pred_region
          %s448 = ssub.s32 32, 32
          %449 = vsyncadd [#allocation5], %s448
          %s450 = smul.addr %s23, 32
          %s451 = scalar_lea.hbm %s4, %s450
          %s453 = sshll.u32 [#allocation6], 4
          %s454 = int_to_ptr.vmem [resolvable:$true] %s453
          %456 = dma.vmem_to_hbm [thread:$0]  %s454, 32, %s451, [#allocation5]
        $region52: #{tpu_custom_call.1} parent=35 // pred_fallthru
          _
        // Predicated region
        $region53: #{tpu_custom_call.1} parent=35 // pred_check
          %p457 = pneg %p140
        $region54: #{tpu_custom_call.1} parent=35 // pred_check_branch
          %459 = sbr.rel (%p457) target = $region56
        $region55: #{tpu_custom_call.1} parent=35 // pred_region
          %460 = dma.done [#allocation5], 32
        $region56: #{tpu_custom_call.1} parent=35 // pred_fallthru
          _
      $region36: #{tpu_custom_call.1} parent=5 // pred_fallthru
        _
      %p461 = scmp.le.s32.totalorder 2, %s14
      // Predicated region
      $region57: #{tpu_custom_call.1} parent=5 // pred_check
        %p462 = pneg %p461
      $region58: #{tpu_custom_call.1} parent=5 // pred_check_branch
        %464 = sbr.rel (%p462) target = $region60
      $region59: #{tpu_custom_call.1} parent=5 // pred_region
        %s465 = ssub.s32 %s14, 2
      $region60: #{tpu_custom_call.1} parent=5 // pred_fallthru
        _
    $region6: #{tpu_custom_call.1} parent=1 // loop_footer
      %s18 = sadd.s32 1, %s14
    $region7: #{tpu_custom_call.1} parent=1 // loop_footer_branch
      %13 = sbr.rel target = $region3
    $region8: #{tpu_custom_call.1} parent=1 // loop_exit
      _
    %466 = vsyncpa [#allocation4], 1
    %s467 = scalar_lea.sflag [#allocation4], 1
    %468 = vsyncpa %s467, 1
    %469 = vsyncpa [#allocation5], 1
    %s470 = scalar_lea.sflag [#allocation5], 1
    %471 = vsyncpa %s470, 1

</llo_original>
